<compile_context>
chip_gen: v7x
topology: tpu7x:2x2x1
jax: 0.10.0
libtpu: 0.0.40
codegen_flags: <defaults>
</compile_context>

<pallas_src>
import functools

import jax
import jax.numpy as jnp
from jax import lax
from jax.experimental import pallas as pl
from jax.experimental.pallas import tpu as pltpu

LEAKY_SLOPE = 0.01   # nn.LeakyReLU default
BN_EPS = 1e-5        # nn.BatchNorm2d default


def _round_up(x, m):
    return (x + m - 1) // m * m


@functools.lru_cache(maxsize=None)
def _vmem_budget():
    # Generation-aware scoped-VMEM budget (v5e/v6e ~128 MiB, v7x 64 MiB/TC), with headroom.
    try:
        return int(pltpu.get_tpu_info().vmem_capacity_bytes * 6 // 10)
    except Exception:
        return 48 * 1024 * 1024   # conservative fallback, safe on all generations


# ---------------------------------------------------------------------------
# Kernel: conv-as-matmul (lane-dense, bf16 -> f32 accum) + per-tile partial BN stats
# ---------------------------------------------------------------------------
def _conv_stats_kernel(p_ref, w_ref, y_ref, s_ref, ss_ref):
    # p_ref : (K, TM)  bf16 transposed im2col patch tile (lane-dense; K = 9*C_in)
    # w_ref : (C, K)   bf16 conv weight, im2col (kh, kw, c_in) column order
    # y_ref : (C, TM)  raw (pre-BN) conv output tile -- lane-dense stores
    # s/ss  : (C, 128) f32 per-tile partial channel sum / sum-of-squares.  The scalar
    #         partial is spread over 128 lanes as value/128 (exact, power of two) so the
    #         block keeps a legal (C, 128) shape; XLA sums the partials back up.
    y = jnp.dot(w_ref[...], p_ref[...], preferred_element_type=jnp.float32)   # MXU
    y_ref[...] = y.astype(y_ref.dtype)
    s = jnp.sum(y, axis=1, keepdims=True)          # XLU lane reductions (free next to MXU)
    ss = jnp.sum(y * y, axis=1, keepdims=True)
    s_ref[...] = jnp.broadcast_to(s, s_ref.shape) * (1.0 / 128.0)
    ss_ref[...] = jnp.broadcast_to(ss, ss_ref.shape) * (1.0 / 128.0)


def _conv_layer_call(patches_t, w_t, tile, y_dtype, vmem_limit):
    K, Mp = patches_t.shape
    C = w_t.shape[0]
    n_tiles = Mp // tile
    return pl.pallas_call(
        _conv_stats_kernel,
        out_shape=(jax.ShapeDtypeStruct((C, Mp), y_dtype),
                   jax.ShapeDtypeStruct((C, n_tiles * 128), jnp.float32),
                   jax.ShapeDtypeStruct((C, n_tiles * 128), jnp.float32)),
        grid=(n_tiles,),
        in_specs=[pl.BlockSpec((K, tile), lambda i: (0, i)),
                  pl.BlockSpec((C, K), lambda i: (0, 0))],
        out_specs=(pl.BlockSpec((C, tile), lambda i: (0, i)),
                   pl.BlockSpec((C, 128), lambda i: (0, i)),
                   pl.BlockSpec((C, 128), lambda i: (0, i))),
        compiler_params=pltpu.CompilerParams(
            dimension_semantics=("parallel",),              # independent tiles -> both TCs on v7x
            vmem_limit_bytes=int(vmem_limit),
            allow_input_fusion=[True, False]),              # fuse the im2col producer into the patch DMA
    )(patches_t, w_t)


# ---------------------------------------------------------------------------
# Tile selection with padding-aware VMEM accounting
# ---------------------------------------------------------------------------
def _tile_vmem_bytes(tile, K, C, y_bytes):
    sub_y = 8 * (4 // y_bytes)                       # sublane multiple: 8 (f32) / 16 (bf16)
    patch = _round_up(K, 16) * tile * 2              # bf16 patch block
    yblk = _round_up(C, sub_y) * tile * y_bytes      # conv-output block
    stats = 2 * _round_up(C, 8) * 128 * 4            # two (C, 128) f32 partial-stat blocks
    wts = _round_up(C, 16) * _round_up(K, 128) * 2   # bf16 weight block
    live = _round_up(C, 8) * tile * 4                # f32 y live value (vregs / scratch)
    return 2 * (patch + yblk + stats + wts) + live + (2 << 20)


def _pick_tile(M, K, C, y_bytes, budget, tm_max):
    tile = min(_round_up(max(tm_max, 128), 128), max(128, _round_up(M, 128)))
    while tile > 128 and _tile_vmem_bytes(tile, K, C, y_bytes) > budget:
        tile = max(128, _round_up(tile // 2, 128))
    return tile


# ---------------------------------------------------------------------------
# Channel-first im2col for a 3x3 / stride-2 / pad-1 conv, emitted directly in bf16.
# TODO(synk): a fully in-kernel im2col (9 shifted stride-2 accumulating dots over a padded
#             channel-first tile) would remove even the fused producer reads; for now the
#             producer is left to XLA + allow_input_fusion.
# ---------------------------------------------------------------------------
def _im2col_cf(a_cnhw, out_dtype):
    C, N, H, W = a_cnhw.shape
    Ho = (H - 1) // 2 + 1
    Wo = (W - 1) // 2 + 1
    ap = jnp.pad(a_cnhw.astype(out_dtype), ((0, 0), (0, 0), (1, 1), (1, 1)))   # cast BEFORE pad
    taps = []
    for kh in range(3):
        for kw in range(3):
            taps.append(lax.slice(
                ap, (0, 0, kh, kw),
                (C, N, kh + 2 * (Ho - 1) + 1, kw + 2 * (Wo - 1) + 1),
                (1, 1, 2, 2)))                                  # (C, N, Ho, Wo)
    patches = jnp.stack(taps, axis=0).reshape(9 * C, N * Ho * Wo)   # rows ordered (kh, kw, c_in)
    return patches, (N, Ho, Wo)


# ---------------------------------------------------------------------------
# Parameter init (orthogonal, gain sqrt(2), matching layer_init).  Conv bias dropped: it is
# initialized to 0 and any per-channel constant is a provable no-op under train-mode BN.
# ---------------------------------------------------------------------------
def _orthogonal(key, rows, cols, gain):
    big, small = max(rows, cols), min(rows, cols)
    a = jax.random.normal(key, (big, small), dtype=jnp.float32)
    q, r = jnp.linalg.qr(a)
    q = q * jnp.sign(jnp.diagonal(r))[None, :]
    if rows < cols:
        q = q.T
    return gain * q   # (rows, cols)


def init_encoder_params(key, in_channels, hidden_dims):
    params = []
    c_in = in_channels
    for h in hidden_dims:
        key, k1 = jax.random.split(key)
        w_t = _orthogonal(k1, h, 9 * c_in, gain=2 ** 0.5)   # (C_out, 9*C_in), (kh,kw,c_in) cols
        gamma = jnp.ones((h,), jnp.float32)                 # BN weight
        beta = jnp.zeros((h,), jnp.float32)                 # BN bias
        params.append((w_t, gamma, beta))
        c_in = h
    return params


# ---------------------------------------------------------------------------
# Forward: NCHW in -> NCHW out (matches torch EncoderModule.forward, training mode)
# TODO(synk): BatchNorm2d running_mean/running_var buffers are not tracked (forward-only).
# ---------------------------------------------------------------------------
@functools.partial(jax.jit, static_argnames=("tm",))
def encoder_forward(x_nchw, params, *, tm=2048):
    # Channel-first internally so the big M = N*Ho*Wo axis is the 128-lane axis of every block.
    a = jnp.transpose(x_nchw, (1, 0, 2, 3)).astype(jnp.float32)   # (C, N, H, W)
    n_layers = len(params)
    budget = _vmem_budget()
    for li, (w_t, gamma, beta) in enumerate(params):
        C = w_t.shape[0]
        y_dtype = jnp.float32 if li == n_layers - 1 else jnp.bfloat16

        patches, (N, Ho, Wo) = _im2col_cf(a, jnp.bfloat16)        # (9*C_in, M) bf16
        K, M = patches.shape

        tile = _pick_tile(M, K, C, jnp.dtype(y_dtype).itemsize, budget, tm)
        Mp = _round_up(M, tile)
        if Mp != M:
            # Zero columns contribute exactly 0 to sum/sumsq (no conv bias), and the
            # mean/var below divide by the true M -> stats stay exact.
            patches = jnp.pad(patches, ((0, 0), (0, Mp - M)))

        y_t, ps, pss = _conv_layer_call(patches, w_t.astype(jnp.bfloat16), tile, y_dtype, budget)

        # Train-mode BatchNorm statistics over (N, Ho, Wo), per channel.  Tiny (C,) math;
        # scale/shift precomputed once so the per-element epilogue is a single FMA + select.
        s = jnp.sum(ps, axis=1)
        ss = jnp.sum(pss, axis=1)
        mean = s / M
        var = jnp.maximum(ss / M - mean * mean, 0.0)
        scale = gamma * lax.rsqrt(var + BN_EPS)
        shift = beta - mean * scale

        yn = y_t[:, :M].astype(jnp.float32) * scale[:, None] + shift[:, None]
        act = jnp.where(yn >= 0, yn, LEAKY_SLOPE * yn)   # fuses into the next layer's im2col
        a = act.reshape(C, N, Ho, Wo)
    return jnp.transpose(a, (1, 0, 2, 3))                # back to NCHW


# ---------------------------------------------------------------------------
# Pure-JAX f32 reference (same math, highest precision) for the correctness check
# ---------------------------------------------------------------------------
def reference_forward(x_nchw, params):
    a = jnp.transpose(x_nchw, (1, 0, 2, 3)).astype(jnp.float32)
    for (w_t, gamma, beta) in params:
        patches, (N, Ho, Wo) = _im2col_cf(a, jnp.float32)
        y = jnp.dot(w_t, patches, precision=lax.Precision.HIGHEST)     # (C, M)
        mean = jnp.mean(y, axis=1, keepdims=True)
        var = jnp.mean(jnp.square(y - mean), axis=1, keepdims=True)
        yn = (y - mean) * lax.rsqrt(var + BN_EPS) * gamma[:, None] + beta[:, None]
        act = jnp.where(yn >= 0, yn, LEAKY_SLOPE * yn)
        a = act.reshape(w_t.shape[0], N, Ho, Wo)
    return jnp.transpose(a, (1, 0, 2, 3))


if __name__ == "__main__":
    key = jax.random.PRNGKey(0)
    kx, kp = jax.random.split(key)

    in_channels = 4
    hidden_dims = [8, 16]
    x = jax.random.normal(kx, (2, in_channels, 16, 16), dtype=jnp.float32)

    params = init_encoder_params(kp, in_channels, hidden_dims)

    # tm=128 at these toy sizes so layer 1 (M = 2*8*8 = 512) runs a 4-step grid and
    # exercises the per-tile partial-stat reduction path.
    out = jax.block_until_ready(encoder_forward(x, params, tm=128))

    # sanity: two stride-2 convs -> spatial 16 -> 8 -> 4, channels -> 16
    assert out.shape == (2, hidden_dims[-1], 4, 4), out.shape
    assert bool(jnp.all(jnp.isfinite(out)))

    # numeric check vs f32 reference (loose tolerance: matmuls and intermediates are bf16)
    ref = jax.block_until_ready(reference_forward(x, params))
    err = float(jnp.max(jnp.abs(out - ref)))
    assert err < 0.15, f"max abs error vs reference too large: {err}"

    print("KERNEL_OK")
</pallas_src>

<mosaic_0001>
module attributes {stable_mosaic.version = 11 : i64} {
  func.func @_conv_stats_kernel(%arg0: i32, %arg1: memref<36x128xbf16, #tpu.memory_space<vmem>>, %arg2: memref<8x36xbf16, #tpu.memory_space<vmem>>, %arg3: memref<8x128xbf16, #tpu.memory_space<vmem>>, %arg4: memref<8x128xf32, #tpu.memory_space<vmem>>, %arg5: memref<8x128xf32, #tpu.memory_space<vmem>>) attributes {dimension_semantics = [#tpu.dimension_semantics<parallel>], iteration_bounds = array<i64: 1>, scalar_prefetch = 0 : i64, scratch_operands = 0 : i64, tpu.core_type = #tpu.core_type<tc>, window_params = [{transform_indices = @transform_0, window_bounds = array<i64: 36, 128>}, {pipeline_mode = #tpu.pipeline_mode<synchronous>, transform_indices = @transform_1, window_bounds = array<i64: 8, 36>}, {transform_indices = @transform_2, window_bounds = array<i64: 8, 128>}, {transform_indices = @transform_3, window_bounds = array<i64: 8, 128>}, {transform_indices = @transform_4, window_bounds = array<i64: 8, 128>}]} {
    %c0 = arith.constant 0 : index
    %c0_0 = arith.constant 0 : index
    %0 = vector.load %arg2[%c0, %c0_0] : memref<8x36xbf16, #tpu.memory_space<vmem>>, vector<8x36xbf16>
    %c0_1 = arith.constant 0 : index
    %c0_2 = arith.constant 0 : index
    %1 = vector.load %arg1[%c0_1, %c0_2] : memref<36x128xbf16, #tpu.memory_space<vmem>>, vector<36x128xbf16>
    %cst = arith.constant dense<0.000000e+00> : vector<8x128xf32>
    %2 = tpu.matmul %0, %1, %cst {dimension_numbers = #tpu.dot_dimension_numbers<[1], [0], [0], [1], [0, 0, 1, 1], [], []>} : vector<8x36xbf16>, vector<36x128xbf16>, vector<8x128xf32> -> vector<8x128xf32>
    %3 = arith.truncf %2 : vector<8x128xf32> to vector<8x128xbf16>
    %c0_3 = arith.constant 0 : index
    %c0_4 = arith.constant 0 : index
    %4 = vector.load %arg3[%c0_3, %c0_4] : memref<8x128xbf16, #tpu.memory_space<vmem>>, vector<8x128xbf16>
    tpu.vector_store %arg3[%c0_3, %c0_4], %3 {strides = array<i32>} : memref<8x128xbf16, #tpu.memory_space<vmem>>, vector<8x128xbf16>,
    %cst_5 = arith.constant dense<0.000000e+00> : vector<8xf32>
    %5 = vector.multi_reduction <add>, %2, %cst_5 [1] : vector<8x128xf32> to vector<8xf32>
    %6 = vector.shape_cast %5 : vector<8xf32> to vector<8x1xf32>
    %7 = arith.mulf %2, %2 : vector<8x128xf32>
    %cst_6 = arith.constant dense<0.000000e+00> : vector<8xf32>
    %8 = vector.multi_reduction <add>, %7, %cst_6 [1] : vector<8x128xf32> to vector<8xf32>
    %9 = vector.shape_cast %8 : vector<8xf32> to vector<8x1xf32>
    %10 = vector.shape_cast %6 : vector<8x1xf32> to vector<8x1xf32>
    %11 = vector.broadcast %10 : vector<8x1xf32> to vector<8x128xf32>
    %cst_7 = arith.constant 7.812500e-03 : f32
    %12 = vector.broadcast %cst_7 : f32 to vector<8x128xf32>
    %13 = arith.mulf %11, %12 : vector<8x128xf32>
    %c0_8 = arith.constant 0 : index
    %c0_9 = arith.constant 0 : index
    %14 = vector.load %arg4[%c0_8, %c0_9] : memref<8x128xf32, #tpu.memory_space<vmem>>, vector<8x128xf32>
    tpu.vector_store %arg4[%c0_8, %c0_9], %13 {strides = array<i32>} : memref<8x128xf32, #tpu.memory_space<vmem>>, vector<8x128xf32>,
    %15 = vector.shape_cast %9 : vector<8x1xf32> to vector<8x1xf32>
    %16 = vector.broadcast %15 : vector<8x1xf32> to vector<8x128xf32>
    %cst_10 = arith.constant 7.812500e-03 : f32
    %17 = vector.broadcast %cst_10 : f32 to vector<8x128xf32>
    %18 = arith.mulf %16, %17 : vector<8x128xf32>
    %c0_11 = arith.constant 0 : index
    %c0_12 = arith.constant 0 : index
    %19 = vector.load %arg5[%c0_11, %c0_12] : memref<8x128xf32, #tpu.memory_space<vmem>>, vector<8x128xf32>
    tpu.vector_store %arg5[%c0_11, %c0_12], %18 {strides = array<i32>} : memref<8x128xf32, #tpu.memory_space<vmem>>, vector<8x128xf32>,
    return
  }
  func.func @transform_0(%arg0: i32) -> (i32, i32) {
    %c0_i32 = arith.constant 0 : i32
    %c0_i32_0 = arith.constant 0 : i32
    return %c0_i32, %arg0 : i32, i32
  }
  func.func @transform_1(%arg0: i32) -> (i32, i32) {
    %c0_i32 = arith.constant 0 : i32
    %c0_i32_0 = arith.constant 0 : i32
    %c0_i32_1 = arith.constant 0 : i32
    return %c0_i32, %c0_i32_0 : i32, i32
  }
  func.func @transform_2(%arg0: i32) -> (i32, i32) {
    %c0_i32 = arith.constant 0 : i32
    %c0_i32_0 = arith.constant 0 : i32
    return %c0_i32, %arg0 : i32, i32
  }
  func.func @transform_3(%arg0: i32) -> (i32, i32) {
    %c0_i32 = arith.constant 0 : i32
    %c0_i32_0 = arith.constant 0 : i32
    return %c0_i32, %arg0 : i32, i32
  }
  func.func @transform_4(%arg0: i32) -> (i32, i32) {
    %c0_i32 = arith.constant 0 : i32
    %c0_i32_0 = arith.constant 0 : i32
    return %c0_i32, %arg0 : i32, i32
  }
}

module attributes {stable_mosaic.version = 11 : i64} {
  func.func @_conv_stats_kernel(%arg0: i32, %arg1: memref<72x128xbf16, #tpu.memory_space<vmem>>, %arg2: memref<16x72xbf16, #tpu.memory_space<vmem>>, %arg3: memref<16x128xf32, #tpu.memory_space<vmem>>, %arg4: memref<16x128xf32, #tpu.memory_space<vmem>>, %arg5: memref<16x128xf32, #tpu.memory_space<vmem>>) attributes {dimension_semantics = [#tpu.dimension_semantics<parallel>], iteration_bounds = array<i64: 1>, scalar_prefetch = 0 : i64, scratch_operands = 0 : i64, tpu.core_type = #tpu.core_type<tc>, window_params = [{transform_indices = @transform_0, window_bounds = array<i64: 72, 128>}, {pipeline_mode = #tpu.pipeline_mode<synchronous>, transform_indices = @transform_1, window_bounds = array<i64: 16, 72>}, {transform_indices = @transform_2, window_bounds = array<i64: 16, 128>}, {transform_indices = @transform_3, window_bounds = array<i64: 16, 128>}, {transform_indices = @transform_4, window_bounds = array<i64: 16, 128>}]} {
    %c0 = arith.constant 0 : index
    %c0_0 = arith.constant 0 : index
    %0 = vector.load %arg2[%c0, %c0_0] : memref<16x72xbf16, #tpu.memory_space<vmem>>, vector<16x72xbf16>
    %c0_1 = arith.constant 0 : index
    %c0_2 = arith.constant 0 : index
    %1 = vector.load %arg1[%c0_1, %c0_2] : memref<72x128xbf16, #tpu.memory_space<vmem>>, vector<72x128xbf16>
    %cst = arith.constant dense<0.000000e+00> : vector<16x128xf32>
    %2 = tpu.matmul %0, %1, %cst {dimension_numbers = #tpu.dot_dimension_numbers<[1], [0], [0], [1], [0, 0, 1, 1], [], []>} : vector<16x72xbf16>, vector<72x128xbf16>, vector<16x128xf32> -> vector<16x128xf32>
    %c0_3 = arith.constant 0 : index
    %c0_4 = arith.constant 0 : index
    %3 = vector.load %arg3[%c0_3, %c0_4] : memref<16x128xf32, #tpu.memory_space<vmem>>, vector<16x128xf32>
    tpu.vector_store %arg3[%c0_3, %c0_4], %2 {strides = array<i32>} : memref<16x128xf32, #tpu.memory_space<vmem>>, vector<16x128xf32>,
    %cst_5 = arith.constant dense<0.000000e+00> : vector<16xf32>
    %4 = vector.multi_reduction <add>, %2, %cst_5 [1] : vector<16x128xf32> to vector<16xf32>
    %5 = vector.shape_cast %4 : vector<16xf32> to vector<16x1xf32>
    %6 = arith.mulf %2, %2 : vector<16x128xf32>
    %cst_6 = arith.constant dense<0.000000e+00> : vector<16xf32>
    %7 = vector.multi_reduction <add>, %6, %cst_6 [1] : vector<16x128xf32> to vector<16xf32>
    %8 = vector.shape_cast %7 : vector<16xf32> to vector<16x1xf32>
    %9 = vector.shape_cast %5 : vector<16x1xf32> to vector<16x1xf32>
    %10 = vector.broadcast %9 : vector<16x1xf32> to vector<16x128xf32>
    %cst_7 = arith.constant 7.812500e-03 : f32
    %11 = vector.broadcast %cst_7 : f32 to vector<16x128xf32>
    %12 = arith.mulf %10, %11 : vector<16x128xf32>
    %c0_8 = arith.constant 0 : index
    %c0_9 = arith.constant 0 : index
    %13 = vector.load %arg4[%c0_8, %c0_9] : memref<16x128xf32, #tpu.memory_space<vmem>>, vector<16x128xf32>
    tpu.vector_store %arg4[%c0_8, %c0_9], %12 {strides = array<i32>} : memref<16x128xf32, #tpu.memory_space<vmem>>, vector<16x128xf32>,
    %14 = vector.shape_cast %8 : vector<16x1xf32> to vector<16x1xf32>
    %15 = vector.broadcast %14 : vector<16x1xf32> to vector<16x128xf32>
    %cst_10 = arith.constant 7.812500e-03 : f32
    %16 = vector.broadcast %cst_10 : f32 to vector<16x128xf32>
    %17 = arith.mulf %15, %16 : vector<16x128xf32>
    %c0_11 = arith.constant 0 : index
    %c0_12 = arith.constant 0 : index
    %18 = vector.load %arg5[%c0_11, %c0_12] : memref<16x128xf32, #tpu.memory_space<vmem>>, vector<16x128xf32>
    tpu.vector_store %arg5[%c0_11, %c0_12], %17 {strides = array<i32>} : memref<16x128xf32, #tpu.memory_space<vmem>>, vector<16x128xf32>,
    return
  }
  func.func @transform_0(%arg0: i32) -> (i32, i32) {
    %c0_i32 = arith.constant 0 : i32
    %c0_i32_0 = arith.constant 0 : i32
    return %c0_i32, %arg0 : i32, i32
  }
  func.func @transform_1(%arg0: i32) -> (i32, i32) {
    %c0_i32 = arith.constant 0 : i32
    %c0_i32_0 = arith.constant 0 : i32
    %c0_i32_1 = arith.constant 0 : i32
    return %c0_i32, %c0_i32_0 : i32, i32
  }
  func.func @transform_2(%arg0: i32) -> (i32, i32) {
    %c0_i32 = arith.constant 0 : i32
    %c0_i32_0 = arith.constant 0 : i32
    return %c0_i32, %arg0 : i32, i32
  }
  func.func @transform_3(%arg0: i32) -> (i32, i32) {
    %c0_i32 = arith.constant 0 : i32
    %c0_i32_0 = arith.constant 0 : i32
    return %c0_i32, %arg0 : i32, i32
  }
  func.func @transform_4(%arg0: i32) -> (i32, i32) {
    %c0_i32 = arith.constant 0 : i32
    %c0_i32_0 = arith.constant 0 : i32
    return %c0_i32, %arg0 : i32, i32
  }
}

</mosaic_0001>

<llo_original>
// kernel: encoder_forward.3
$region0: #{encoder_forward.3}
  #allocation0 [shape = 'u32[]', space=smem, size = 0x4, offset = 0x4, fixed_abs, tag = 'smem constant byte address 0x4 - core index']
  #allocation1 [shape = 'u32[144,128]{1,0:T(1,128)}', space=vmem, size = 0x12000, scoped, tag = 'internal scratch']
  %s0 = inlined_call_operand.vmem [shape: bf16[36,128], index: 0, kind: input, shape index: {}]
  %s1 = inlined_call_operand.vmem [shape: bf16[8,36], index: 1, kind: input, shape index: {}]
  %s2 = inlined_call_operand.vmem [shape: bf16[8,128], index: 2, kind: output, shape index: {0}]
  %s3 = inlined_call_operand.vmem [shape: f32[8,128], index: 3, kind: output, shape index: {1}]
  %s4 = inlined_call_operand.vmem [shape: f32[8,128], index: 4, kind: output, shape index: {2}]
  %5 = xla_tuple %s2, %s3, %s4
  %s6 = sld [smem:[#allocation0]]
  $region34: #{encoder_forward.3} parent=0
    _
  %s8 = ssub.s32 1, %s6
  %s9 = scalar_select 0, %s8, %s6
  // Predicated region
  $region2: #{encoder_forward.3} parent=0 // pred_check
    _
  $region3: #{encoder_forward.3} parent=0 // pred_check_branch
    %11 = sbr.rel (0) target = $region5
  $region4: #{encoder_forward.3} parent=0 // pred_region
    _
  $region5: #{encoder_forward.3} parent=0 // pred_fallthru
    _
  // Predicated region
  $region6: #{encoder_forward.3} parent=0 // pred_check
    _
  $region7: #{encoder_forward.3} parent=0 // pred_check_branch
    %13 = sbr.rel (0) target = $region9
  $region8: #{encoder_forward.3} parent=0 // pred_region
    _
  $region9: #{encoder_forward.3} parent=0 // pred_fallthru
    _
  %v15 = vld [vmem:[%s1] sm:$0xf]
  %v16 = vld [vmem:[%s0] sm:$0xf]
  %v17 = vld [vmem:[%s0 + $0x4] sm:$0xf]
  %v18 = vld [vmem:[%s0 + $0x8] sm:$0xf]
  %v19 = vld [vmem:[%s0 + $0xc] sm:$0xf]
  %v20 = vld [vmem:[%s0 + $0x10] sm:$0x3]
  %v26 = vunpack.c.l.b16 %v16
  %v27 = vunpack.c.l.b16 %v17
  %v28 = vunpack.c.l.b16 %v18
  %v29 = vunpack.c.l.b16 %v19
  %v30 = vunpack.c.l.b16 %v20
  %v31 = vpack.c.b16 %v27, %v26
  %v32 = vpack.c.b16 %v29, %v28
  %v33 = vpack.c.b16 %v30, %v30
  %vm36 = vcmask 293888
  %v38 = vsel %vm36, %v15, 0
  %vm40 = vcmask 1041408
  %v42 = vsel %vm40, %v33, 0
  %44 = vmatprep.subr.bf16.mxu0 0
  %45 = vmatpush1.bf16.msra.mxu0 %v31
  %46 = vmatprep.subr.bf16.mxu0 0
  %47 = vmatpush1.bf16.msra.mxu0 %v32
  %48 = vmatprep.subr.bf16.mxu0 0
  %49 = vmatpush1.bf16.msra.mxu0 %v42
  %50 = vmatprep.subr.bf16.mxu0 0
  %51 = vmatpush1.bf16.msra.mxu0 0
  %52 = vmatprep.subr.bf16.mxu0 0
  %53 = vmatpush1.bf16.msra.mxu0 0
  %54 = vmatprep.subr.bf16.mxu0 0
  %55 = vmatpush1.bf16.msra.mxu0 0
  %56 = vmatprep.subr.bf16.mxu0 0
  %57 = vmatpush1.bf16.msra.mxu0 0
  %58 = vmatprep.subr.bf16.mxu0 0
  %59 = vmatpush1.bf16.msra.mxu0 0
  %60 = vmatprep.subr.bf16.mxu0 0
  %61 = vmatpush1.bf16.msra.mxu0 0
  %62 = vmatprep.subr.bf16.mxu0 0
  %63 = vmatpush1.bf16.msra.mxu0 0
  %64 = vmatprep.subr.bf16.mxu0 0
  %65 = vmatpush1.bf16.msra.mxu0 0
  %66 = vmatprep.subr.bf16.mxu0 0
  %67 = vmatpush1.bf16.msra.mxu0 0
  %68 = vmatprep.subr.bf16.mxu0 0
  %69 = vmatpush1.bf16.msra.mxu0 0
  %70 = vmatprep.subr.bf16.mxu0 0
  %71 = vmatpush1.bf16.msra.mxu0 0
  %72 = vmatprep.subr.bf16.mxu0 0
  %73 = vmatpush1.bf16.msra.mxu0 0
  %74 = vmatprep.subr.bf16.mxu0 0
  %75 = vmatpush1.bf16.msra.mxu0 0
  %76 = vmatprep.mubr.bf16.mxu0 0
  %77 = vmatmul.mubr.bf16.gmra.mrb[0].mxu0 %v38
  %v78 = vpop.f32.mrb[0].mxu0
  %v79 = vadd.f32 0.0, %v78
  %v80 = vpop.f32.mrb[0].mxu0
  %v81 = vpop.f32.mrb[0].mxu0
  %v82 = vpop.f32.mrb[0].mxu0
  %83 = vdwg.mxu0
  %v84 = vpack.c.bf16 %v79, %v79
  %85 = vst [vmem:[%s2] sm:$0xf] %v84
  %86 = vadd.xlane.f32.xlu0 %v79
  %v87 = vpop.xlane.xlu0 %86
  %v88 = vmul.f32 %v79, %v79
  %89 = vadd.xlane.f32.xlu0 %v88
  %v90 = vpop.xlane.xlu0 %89
  %v91 = vmul.f32 %v87, 0.0078125
  %92 = vst [vmem:[%s3] sm:$0xff] %v91
  %v93 = vmul.f32 %v90, 0.0078125
  %94 = vst [vmem:[%s4] sm:$0xff] %v93
  // Predicated region
  $region10: #{encoder_forward.3} parent=0 // pred_check
    _
  $region11: #{encoder_forward.3} parent=0 // pred_check_branch
    %96 = sbr.rel (0) target = $region13
  $region12: #{encoder_forward.3} parent=0 // pred_region
    _
  $region13: #{encoder_forward.3} parent=0 // pred_fallthru
    _
  // Predicated region
  $region14: #{encoder_forward.3} parent=0 // pred_check
    _
  $region15: #{encoder_forward.3} parent=0 // pred_check_branch
    %98 = sbr.rel (0) target = $region17
  $region16: #{encoder_forward.3} parent=0 // pred_region
    _
  $region17: #{encoder_forward.3} parent=0 // pred_fallthru
    _
  // Predicated region
  $region18: #{encoder_forward.3} parent=0 // pred_check
    _
  $region19: #{encoder_forward.3} parent=0 // pred_check_branch
    %100 = sbr.rel (0) target = $region21
  $region20: #{encoder_forward.3} parent=0 // pred_region
    _
  $region21: #{encoder_forward.3} parent=0 // pred_fallthru
    _
  // Predicated region
  $region22: #{encoder_forward.3} parent=0 // pred_check
    _
  $region23: #{encoder_forward.3} parent=0 // pred_check_branch
    %102 = sbr.rel (0) target = $region25
  $region24: #{encoder_forward.3} parent=0 // pred_region
    _
  $region25: #{encoder_forward.3} parent=0 // pred_fallthru
    _
  // Predicated region
  $region26: #{encoder_forward.3} parent=0 // pred_check
    _
  $region27: #{encoder_forward.3} parent=0 // pred_check_branch
    %104 = sbr.rel (0) target = $region29
  $region28: #{encoder_forward.3} parent=0 // pred_region
    _
  $region29: #{encoder_forward.3} parent=0 // pred_fallthru
    _
  // Predicated region
  $region30: #{encoder_forward.3} parent=0 // pred_check
    _
  $region31: #{encoder_forward.3} parent=0 // pred_check_branch
    %106 = sbr.rel (0) target = $region33
  $region32: #{encoder_forward.3} parent=0 // pred_region
    _
  $region33: #{encoder_forward.3} parent=0 // pred_fallthru
    _

// kernel: encoder_forward.4
$region0: #{encoder_forward.4}
  #allocation0 [shape = 'u32[]', space=smem, size = 0x4, offset = 0x4, fixed_abs, tag = 'smem constant byte address 0x4 - core index']
  #allocation1 [shape = 'u32[144,128]{1,0:T(1,128)}', space=vmem, size = 0x12000, scoped, tag = 'internal scratch']
  #allocation2 [shape = 'u32[2048]{0}', space=vmem, size = 0x2000, scoped, tag = 'scoped memory for encoder_forward.4']
  #allocation3 [shape = 'u32[2048]{0}', space=vmem, size = 0x2000, scoped, tag = 'scoped memory for encoder_forward.4']
  #allocation4 [shape = 'u32[2048]{0}', space=vmem, size = 0x2000, scoped, tag = 'scoped memory for encoder_forward.4']
  #allocation5 [shape = 'u32[2048]{0}', space=vmem, size = 0x2000, scoped, tag = 'scoped memory for encoder_forward.4']
  #allocation6 [shape = 'u32[2048]{0}', space=vmem, size = 0x2000, scoped, tag = 'scoped memory for encoder_forward.4']
  %s0 = inlined_call_operand.vmem [shape: bf16[16,72], index: 0, kind: input, shape index: {}]
  %s1 = inlined_call_operand.vmem [shape: bf16[72,32], index: 1, kind: input, shape index: {}]
  %s2 = inlined_call_operand.<no memory space> [shape: bf16[], index: 2, kind: input, shape index: {}]
  %s3 = inlined_call_operand.vmem [shape: f32[16,128], index: 3, kind: output, shape index: {0}]
  %s4 = inlined_call_operand.vmem [shape: f32[16,128], index: 4, kind: output, shape index: {1}]
  %s5 = inlined_call_operand.vmem [shape: f32[16,128], index: 5, kind: output, shape index: {2}]
  %6 = xla_tuple %s3, %s4, %s5
  %s7 = sld [smem:[#allocation0]]
  $region34: #{encoder_forward.4} parent=0
    _
  %s9 = ssub.s32 1, %s7
  %s10 = scalar_select 0, %s9, %s7
  %v11 = vstv %s2
  %v12 = vunpack.i.l.bf16 %v11
  %v14 = vunpack.i.h.bf16 %v11
  $region1: #{encoder_forward.4} parent=0
    #allocation7 [shape = 'u8[18432]{0}', space=vmem, size = 0x4800, dematerialized = true, scoped, tag = 'FusionAdapter Buffer %fusion.1 = bf16[72,128]{1,0:T(8,128)(2,1)} fusion(%param_1.21, %param_2.20), kind=kLoop, calls=%fused_computation.21.clone, metadata={op_name="jit(encoder_forward)/jit(_pad)/pad" stack_frame_id=36}']
    // Predicated region
    $region2: #{encoder_forward.4} parent=1 // pred_check
      _
    $region3: #{encoder_forward.4} parent=1 // pred_check_branch
      %17 = sbr.rel (0) target = $region5
    $region4: #{encoder_forward.4} parent=1 // pred_region
      _
    $region5: #{encoder_forward.4} parent=1 // pred_fallthru
      _
    // Predicated region
    $region6: #{encoder_forward.4} parent=1 // pred_check
      _
    $region7: #{encoder_forward.4} parent=1 // pred_check_branch
      %19 = sbr.rel (0) target = $region9
    $region8: #{encoder_forward.4} parent=1 // pred_region
      _
    $region9: #{encoder_forward.4} parent=1 // pred_fallthru
      _
    %s21 = sor.u32 255, 127
    %s22 = sand.u32 %s21, 85
    %s23 = sshrl.u32 %s22, 1
    %s24 = sor.u32 %s22, %s23
    %s25 = sand.u32 51, %s24
    %s26 = sshrl.u32 %s25, 2
    %s27 = sor.u32 %s25, %s26
    %s28 = sand.u32 15, %s27
    %v29 = vld [vmem:[%s1] sm:%s28]
    %v30 = vunpack.c.l.bf16 %v29
    %v31 = vunpack.c.h.bf16 %v29
    %v32 = vlaneseq
    %v33 = vand.u32 %v32, 127
    %vm35 = vcmp.lt.s32.totalorder %v33, 32
    %v36 = vsel %vm35, %v30, %v12
    %v37 = vpack.c.bf16 0.0, %v36
    %39 = vst [vmem:[#allocation7] sm:$0xf] %v37
    %s40 = scalar_lea.vmem %s1, 4
    %s42 = sor.u32 255, 127
    %s43 = sand.u32 %s42, 85
    %s44 = sshrl.u32 %s43, 1
    %s45 = sor.u32 %s43, %s44
    %s46 = sand.u32 51, %s45
    %s47 = sshrl.u32 %s46, 2
    %s48 = sor.u32 %s46, %s47
    %s49 = sand.u32 15, %s48
    %v50 = vld [vmem:[%s40] sm:%s49]
    %v51 = vunpack.c.l.bf16 %v50
    %v52 = vunpack.c.h.bf16 %v50
    %v53 = vlaneseq
    %v54 = vand.u32 %v53, 127
    %vm56 = vcmp.lt.s32.totalorder %v54, 32
    %v57 = vsel %vm56, %v51, %v12
    %s58 = scalar_lea.vmem [#allocation7], 4
    %v59 = vpack.c.bf16 0.0, %v57
    %61 = vst [vmem:[%s58] sm:$0xf] %v59
    %s62 = scalar_lea.vmem %s1, 8
    %s64 = sor.u32 255, 127
    %s65 = sand.u32 %s64, 85
    %s66 = sshrl.u32 %s65, 1
    %s67 = sor.u32 %s65, %s66
    %s68 = sand.u32 51, %s67
    %s69 = sshrl.u32 %s68, 2
    %s70 = sor.u32 %s68, %s69
    %s71 = sand.u32 15, %s70
    %v72 = vld [vmem:[%s62] sm:%s71]
    %v73 = vunpack.c.l.bf16 %v72
    %v74 = vunpack.c.h.bf16 %v72
    %v75 = vlaneseq
    %v76 = vand.u32 %v75, 127
    %vm78 = vcmp.lt.s32.totalorder %v76, 32
    %v79 = vsel %vm78, %v73, %v12
    %s80 = scalar_lea.vmem [#allocation7], 8
    %v81 = vpack.c.bf16 0.0, %v79
    %83 = vst [vmem:[%s80] sm:$0xf] %v81
    %s84 = scalar_lea.vmem %s1, 12
    %s86 = sor.u32 255, 127
    %s87 = sand.u32 %s86, 85
    %s88 = sshrl.u32 %s87, 1
    %s89 = sor.u32 %s87, %s88
    %s90 = sand.u32 51, %s89
    %s91 = sshrl.u32 %s90, 2
    %s92 = sor.u32 %s90, %s91
    %s93 = sand.u32 15, %s92
    %v94 = vld [vmem:[%s84] sm:%s93]
    %v95 = vunpack.c.l.bf16 %v94
    %v96 = vunpack.c.h.bf16 %v94
    %v97 = vlaneseq
    %v98 = vand.u32 %v97, 127
    %vm100 = vcmp.lt.s32.totalorder %v98, 32
    %v101 = vsel %vm100, %v95, %v12
    %s102 = scalar_lea.vmem [#allocation7], 12
    %v103 = vpack.c.bf16 0.0, %v101
    %105 = vst [vmem:[%s102] sm:$0xf] %v103
    %s106 = scalar_lea.vmem %s1, 16
    %s108 = sor.u32 255, 127
    %s109 = sand.u32 %s108, 85
    %s110 = sshrl.u32 %s109, 1
    %s111 = sor.u32 %s109, %s110
    %s112 = sand.u32 51, %s111
    %s113 = sshrl.u32 %s112, 2
    %s114 = sor.u32 %s112, %s113
    %s115 = sand.u32 15, %s114
    %v116 = vld [vmem:[%s106] sm:%s115]
    %v117 = vunpack.c.l.bf16 %v116
    %v118 = vunpack.c.h.bf16 %v116
    %v119 = vlaneseq
    %v120 = vand.u32 %v119, 127
    %vm122 = vcmp.lt.s32.totalorder %v120, 32
    %v123 = vsel %vm122, %v117, %v12
    %s124 = scalar_lea.vmem [#allocation7], 16
    %v125 = vpack.c.bf16 0.0, %v123
    %127 = vst [vmem:[%s124] sm:$0xf] %v125
    %s128 = scalar_lea.vmem %s1, 20
    %s130 = sor.u32 255, 127
    %s131 = sand.u32 %s130, 85
    %s132 = sshrl.u32 %s131, 1
    %s133 = sor.u32 %s131, %s132
    %s134 = sand.u32 51, %s133
    %s135 = sshrl.u32 %s134, 2
    %s136 = sor.u32 %s134, %s135
    %s137 = sand.u32 15, %s136
    %v138 = vld [vmem:[%s128] sm:%s137]
    %v139 = vunpack.c.l.bf16 %v138
    %v140 = vunpack.c.h.bf16 %v138
    %v141 = vlaneseq
    %v142 = vand.u32 %v141, 127
    %vm144 = vcmp.lt.s32.totalorder %v142, 32
    %v145 = vsel %vm144, %v139, %v12
    %s146 = scalar_lea.vmem [#allocation7], 20
    %v147 = vpack.c.bf16 0.0, %v145
    %149 = vst [vmem:[%s146] sm:$0xf] %v147
    %s150 = scalar_lea.vmem %s1, 24
    %s152 = sor.u32 255, 127
    %s153 = sand.u32 %s152, 85
    %s154 = sshrl.u32 %s153, 1
    %s155 = sor.u32 %s153, %s154
    %s156 = sand.u32 51, %s155
    %s157 = sshrl.u32 %s156, 2
    %s158 = sor.u32 %s156, %s157
    %s159 = sand.u32 15, %s158
    %v160 = vld [vmem:[%s150] sm:%s159]
    %v161 = vunpack.c.l.bf16 %v160
    %v162 = vunpack.c.h.bf16 %v160
    %v163 = vlaneseq
    %v164 = vand.u32 %v163, 127
    %vm166 = vcmp.lt.s32.totalorder %v164, 32
    %v167 = vsel %vm166, %v161, %v12
    %s168 = scalar_lea.vmem [#allocation7], 24
    %v169 = vpack.c.bf16 0.0, %v167
    %171 = vst [vmem:[%s168] sm:$0xf] %v169
    %s172 = scalar_lea.vmem %s1, 28
    %s174 = sor.u32 255, 127
    %s175 = sand.u32 %s174, 85
    %s176 = sshrl.u32 %s175, 1
    %s177 = sor.u32 %s175, %s176
    %s178 = sand.u32 51, %s177
    %s179 = sshrl.u32 %s178, 2
    %s180 = sor.u32 %s178, %s179
    %s181 = sand.u32 15, %s180
    %v182 = vld [vmem:[%s172] sm:%s181]
    %v183 = vunpack.c.l.bf16 %v182
    %v184 = vunpack.c.h.bf16 %v182
    %v185 = vlaneseq
    %v186 = vand.u32 %v185, 127
    %vm188 = vcmp.lt.s32.totalorder %v186, 32
    %v189 = vsel %vm188, %v183, %v12
    %s190 = scalar_lea.vmem [#allocation7], 28
    %v191 = vpack.c.bf16 0.0, %v189
    %193 = vst [vmem:[%s190] sm:$0xf] %v191
    %s194 = scalar_lea.vmem %s1, 32
    %s196 = sor.u32 255, 127
    %s197 = sand.u32 %s196, 85
    %s198 = sshrl.u32 %s197, 1
    %s199 = sor.u32 %s197, %s198
    %s200 = sand.u32 51, %s199
    %s201 = sshrl.u32 %s200, 2
    %s202 = sor.u32 %s200, %s201
    %s203 = sand.u32 15, %s202
    %v204 = vld [vmem:[%s194] sm:%s203]
    %v205 = vunpack.c.l.bf16 %v204
    %v206 = vunpack.c.h.bf16 %v204
    %v207 = vlaneseq
    %v208 = vand.u32 %v207, 127
    %vm210 = vcmp.lt.s32.totalorder %v208, 32
    %v211 = vsel %vm210, %v205, %v12
    %s212 = scalar_lea.vmem [#allocation7], 32
    %v213 = vpack.c.bf16 0.0, %v211
    %215 = vst [vmem:[%s212] sm:$0xf] %v213
    %v217 = vld [vmem:[%s0] sm:$0xf]
    %v218 = vld [vmem:[%s0 + $0x4] sm:$0xf]
    %v219 = vld [vmem:[#allocation7] sm:$0xf]
    %v220 = vld [vmem:[#allocation7 + $0x4] sm:$0xf]
    %v221 = vld [vmem:[#allocation7 + $0x8] sm:$0xf]
    %v222 = vld [vmem:[#allocation7 + $0xc] sm:$0xf]
    %v223 = vld [vmem:[#allocation7 + $0x10] sm:$0xf]
    %v224 = vld [vmem:[#allocation7 + $0x14] sm:$0xf]
    %v225 = vld [vmem:[#allocation7 + $0x18] sm:$0xf]
    %v226 = vld [vmem:[#allocation7 + $0x1c] sm:$0xf]
    %v227 = vld [vmem:[#allocation7 + $0x20] sm:$0xf]
    %v230 = vunpack.c.l.b16 %v217
    %v231 = vunpack.c.l.b16 %v218
    %v232 = vpack.c.b16 %v231, %v230
    %v242 = vunpack.c.l.b16 %v219
    %v243 = vunpack.c.l.b16 %v220
    %v244 = vunpack.c.l.b16 %v221
    %v245 = vunpack.c.l.b16 %v222
    %v246 = vunpack.c.l.b16 %v223
    %v247 = vunpack.c.l.b16 %v224
    %v248 = vunpack.c.l.b16 %v225
    %v249 = vunpack.c.l.b16 %v226
    %v250 = vunpack.c.l.b16 %v227
    %v251 = vpack.c.b16 %v243, %v242
    %v252 = vpack.c.b16 %v245, %v244
    %v253 = vpack.c.b16 %v247, %v246
    %v254 = vpack.c.b16 %v249, %v248
    %v255 = vpack.c.b16 %v250, %v250
    %vm260 = vcmask 588800
    %v262 = vsel %vm260, %v232, 0
    %vm264 = vcmask 1043456
    %v266 = vsel %vm264, %v255, 0
    %268 = vmatprep.subr.bf16.mxu0 0
    %269 = vmatpush1.bf16.msra.mxu0 %v251
    %270 = vmatprep.subr.bf16.mxu0 0
    %271 = vmatpush1.bf16.msra.mxu0 %v252
    %272 = vmatprep.subr.bf16.mxu0 0
    %273 = vmatpush1.bf16.msra.mxu0 %v253
    %274 = vmatprep.subr.bf16.mxu0 0
    %275 = vmatpush1.bf16.msra.mxu0 %v254
    %276 = vmatprep.subr.bf16.mxu0 0
    %277 = vmatpush1.bf16.msra.mxu0 %v266
    %278 = vmatprep.subr.bf16.mxu0 0
    %279 = vmatpush1.bf16.msra.mxu0 0
    %280 = vmatprep.subr.bf16.mxu0 0
    %281 = vmatpush1.bf16.msra.mxu0 0
    %282 = vmatprep.subr.bf16.mxu0 0
    %283 = vmatpush1.bf16.msra.mxu0 0
    %284 = vmatprep.subr.bf16.mxu0 0
    %285 = vmatpush1.bf16.msra.mxu0 0
    %286 = vmatprep.subr.bf16.mxu0 0
    %287 = vmatpush1.bf16.msra.mxu0 0
    %288 = vmatprep.subr.bf16.mxu0 0
    %289 = vmatpush1.bf16.msra.mxu0 0
    %290 = vmatprep.subr.bf16.mxu0 0
    %291 = vmatpush1.bf16.msra.mxu0 0
    %292 = vmatprep.subr.bf16.mxu0 0
    %293 = vmatpush1.bf16.msra.mxu0 0
    %294 = vmatprep.subr.bf16.mxu0 0
    %295 = vmatpush1.bf16.msra.mxu0 0
    %296 = vmatprep.subr.bf16.mxu0 0
    %297 = vmatpush1.bf16.msra.mxu0 0
    %298 = vmatprep.subr.bf16.mxu0 0
    %299 = vmatpush1.bf16.msra.mxu0 0
    %300 = vmatprep.mubr.bf16.mxu0 0
    %301 = vmatmul.mubr.bf16.gmra.mrb[0].mxu0 %v262
    %v302 = vpop.f32.mrb[0].mxu0
    %v303 = vadd.f32 0.0, %v302
    %v304 = vpop.f32.mrb[0].mxu0
    %v305 = vpop.f32.mrb[0].mxu0
    %v306 = vadd.f32 0.0, %v305
    %v307 = vpop.f32.mrb[0].mxu0
    %308 = vdwg.mxu0
    %309 = vst [vmem:[%s3] sm:$0xff] %v303
    %310 = vst [vmem:[%s3 + $0x8] sm:$0xff] %v306
    %311 = vadd.xlane.f32.xlu0 %v303
    %v312 = vpop.xlane.xlu0 %311
    %313 = vadd.xlane.f32.xlu0 %v306
    %v314 = vpop.xlane.xlu0 %313
    %v315 = vmul.f32 %v303, %v303
    %v316 = vmul.f32 %v306, %v306
    %317 = vadd.xlane.f32.xlu0 %v315
    %v318 = vpop.xlane.xlu0 %317
    %319 = vadd.xlane.f32.xlu0 %v316
    %v320 = vpop.xlane.xlu0 %319
    %v321 = vmul.f32 %v312, 0.0078125
    %v322 = vmul.f32 %v314, 0.0078125
    %323 = vst [vmem:[%s4] sm:$0xff] %v321
    %324 = vst [vmem:[%s4 + $0x8] sm:$0xff] %v322
    %v325 = vmul.f32 %v318, 0.0078125
    %v326 = vmul.f32 %v320, 0.0078125
    %327 = vst [vmem:[%s5] sm:$0xff] %v325
    %328 = vst [vmem:[%s5 + $0x8] sm:$0xff] %v326
    // Predicated region
    $region10: #{encoder_forward.4} parent=1 // pred_check
      _
    $region11: #{encoder_forward.4} parent=1 // pred_check_branch
      %330 = sbr.rel (0) target = $region13
    $region12: #{encoder_forward.4} parent=1 // pred_region
      _
    $region13: #{encoder_forward.4} parent=1 // pred_fallthru
      _
    // Predicated region
    $region14: #{encoder_forward.4} parent=1 // pred_check
      _
    $region15: #{encoder_forward.4} parent=1 // pred_check_branch
      %332 = sbr.rel (0) target = $region17
    $region16: #{encoder_forward.4} parent=1 // pred_region
      _
    $region17: #{encoder_forward.4} parent=1 // pred_fallthru
      _
    // Predicated region
    $region18: #{encoder_forward.4} parent=1 // pred_check
      _
    $region19: #{encoder_forward.4} parent=1 // pred_check_branch
      %334 = sbr.rel (0) target = $region21
    $region20: #{encoder_forward.4} parent=1 // pred_region
      _
    $region21: #{encoder_forward.4} parent=1 // pred_fallthru
      _
    // Predicated region
    $region22: #{encoder_forward.4} parent=1 // pred_check
      _
    $region23: #{encoder_forward.4} parent=1 // pred_check_branch
      %336 = sbr.rel (0) target = $region25
    $region24: #{encoder_forward.4} parent=1 // pred_region
      _
    $region25: #{encoder_forward.4} parent=1 // pred_fallthru
      _
    // Predicated region
    $region26: #{encoder_forward.4} parent=1 // pred_check
      _
    $region27: #{encoder_forward.4} parent=1 // pred_check_branch
      %338 = sbr.rel (0) target = $region29
    $region28: #{encoder_forward.4} parent=1 // pred_region
      _
    $region29: #{encoder_forward.4} parent=1 // pred_fallthru
      _
    // Predicated region
    $region30: #{encoder_forward.4} parent=1 // pred_check
      _
    $region31: #{encoder_forward.4} parent=1 // pred_check_branch
      %340 = sbr.rel (0) target = $region33
    $region32: #{encoder_forward.4} parent=1 // pred_region
      _
    $region33: #{encoder_forward.4} parent=1 // pred_fallthru
      _

</llo_original>
